<compile_context>
chip_gen: v5e
topology: v5e:2x2
jax: 0.10.0
libtpu: 0.0.40
codegen_flags: <defaults>
</compile_context>

<pallas_src>
import functools

import jax
import jax.numpy as jnp
from jax.experimental import pallas as pl
from jax.experimental.pallas import tpu as pltpu

BN_EPS = 1e-5


# --------------------------------------------------------------------------- #
# Small helpers
# --------------------------------------------------------------------------- #
def _vmem_limit_bytes():
    """Generation-dependent scoped-VMEM limit with a safe fallback."""
    try:
        cap = pltpu.get_tpu_info().vmem_capacity_bytes
        return int(min(cap * 3 // 4, 100 * 1024 * 1024))
    except Exception:
        return 32 * 1024 * 1024


def _shift_lanes(v, delta):
    """out[:, s] = v[:, (s + delta) % S]  (callers mask the wrapped positions)."""
    S = v.shape[-1]
    d = delta % S
    if d == 0:
        return v
    return jnp.concatenate([v[:, d:], v[:, :d]], axis=-1)


def _accumulate_taps(p, mask_ref, cout, width):
    """Gather the 9 shifted tap contributions of a 3x3 'same' conv.

    p:        (9*cout, S) f32 -- per-tap 1x1-conv results, tap-major rows.
    mask_ref: (9, 1, S)       -- 1.0 where the tap's source pixel is in bounds.
    """
    S = p.shape[-1]
    y = jnp.zeros((cout, S), jnp.float32)
    t = 0
    for dh in (-1, 0, 1):
        for dw in (-1, 0, 1):
            blk = p[t * cout:(t + 1) * cout, :]          # 8-aligned sublane slice
            shifted = _shift_lanes(blk, dh * width + dw)
            if dh == 0 and dw == 0:
                y = y + shifted                           # centre tap: mask is all ones
            else:
                y = y + shifted * mask_ref[t]
            t += 1
    return y


# --------------------------------------------------------------------------- #
# Pass 1: conv1 -> y1 (pre-BN) + per-sample channel sums / sums of squares
# --------------------------------------------------------------------------- #
def _conv1_kernel(x_ref, w_ref, mask_ref, y_ref, s_ref, sq_ref, *, width):
    cout = y_ref.shape[1]
    x = x_ref[0]                                                       # (Cin, S)
    p = jnp.dot(w_ref[...], x, preferred_element_type=jnp.float32)     # (9*Cout, S)
    y = _accumulate_taps(p, mask_ref, cout, width)                     # (Cout, S)
    y_ref[0] = y.astype(y_ref.dtype)
    s_ref[0] = jnp.sum(y, axis=1, keepdims=True)
    sq_ref[0] = jnp.sum(y * y, axis=1, keepdims=True)


# --------------------------------------------------------------------------- #
# Pass 2: BN1 (folded scale/shift) + ReLU + conv2 -> y2 (pre-BN) + stats
# --------------------------------------------------------------------------- #
def _bn_relu_conv2_kernel(y1_ref, sc_ref, sh_ref, w_ref, mask_ref,
                          y_ref, s_ref, sq_ref, *, width):
    cout = y_ref.shape[1]
    a = jnp.maximum(y1_ref[0].astype(jnp.float32) * sc_ref[...] + sh_ref[...], 0.0)
    p = jnp.dot(w_ref[...], a, preferred_element_type=jnp.float32)     # (9*Cout, S)
    y = _accumulate_taps(p, mask_ref, cout, width)
    y_ref[0] = y.astype(y_ref.dtype)
    s_ref[0] = jnp.sum(y, axis=1, keepdims=True)
    sq_ref[0] = jnp.sum(y * y, axis=1, keepdims=True)


# --------------------------------------------------------------------------- #
# Pass 3: BN2 (folded scale/shift) + ReLU + MaxPool2d(2)
# --------------------------------------------------------------------------- #
def _bn_relu_pool_kernel(y2_ref, sc_ref, sh_ref, sel_ref, x_ref, pool_ref, *, width):
    act = jnp.maximum(y2_ref[0].astype(jnp.float32) * sc_ref[...] + sh_ref[...], 0.0)
    x_ref[0] = act.astype(x_ref.dtype)
    # 2x2/stride-2 max pool (H, W even): window max over {s, s+1, s+W, s+W+1},
    # computed on the in-register value, then a 0/1 selection matmul keeps
    # s = 2*hh*W + 2*ww (lane-dense, no strided gathers, no re-read of x_ref).
    colmax = jnp.maximum(act, _shift_lanes(act, 1))
    rowmax = jnp.maximum(colmax, _shift_lanes(colmax, width))
    pool_ref[0] = jnp.dot(rowmax, sel_ref[...],
                          preferred_element_type=jnp.float32).astype(pool_ref.dtype)


# --------------------------------------------------------------------------- #
# Host-side constant builders and BN finalization
# --------------------------------------------------------------------------- #
def _conv_weight_tapmajor(w):
    """(Cout, Cin, 3, 3) -> (9*Cout, Cin), tap-major rows (kh*3 + kw)."""
    cout, cin = w.shape[0], w.shape[1]
    return jnp.transpose(w, (2, 3, 0, 1)).reshape(9 * cout, cin).astype(jnp.float32)


def _tap_masks(H, W):
    s = jnp.arange(H * W, dtype=jnp.int32)
    h, w = s // W, s % W
    rows = []
    for dh in (-1, 0, 1):
        for dw in (-1, 0, 1):
            rows.append((h + dh >= 0) & (h + dh < H) & (w + dw >= 0) & (w + dw < W))
    return jnp.stack(rows).astype(jnp.float32).reshape(9, 1, H * W)


def _pool_select(H, W):
    Hh, Wh = H // 2, W // 2
    q = jnp.arange(Hh * Wh, dtype=jnp.int32)
    src = 2 * (q // Wh) * W + 2 * (q % Wh)
    return (jnp.arange(H * W, dtype=jnp.int32)[:, None] == src[None, :]).astype(jnp.float32)


def _bn_scale_shift(s_per_n, sq_per_n, gamma, beta, count):
    """Fold training-mode BN (biased batch variance) into per-channel scale/shift."""
    total = jnp.sum(s_per_n, axis=0)[:, 0]
    total_sq = jnp.sum(sq_per_n, axis=0)[:, 0]
    mean = total / count
    var = jnp.maximum(total_sq / count - mean * mean, 0.0)
    scale = gamma * jax.lax.rsqrt(var + BN_EPS)
    shift = beta - mean * scale
    return (scale.reshape(-1, 1).astype(jnp.float32),
            shift.reshape(-1, 1).astype(jnp.float32))


# --------------------------------------------------------------------------- #
# Wrapper
# --------------------------------------------------------------------------- #
def encoder_forward(x_nchw, params, inter_dtype=jnp.bfloat16):
    """Encoder forward pass.  Input/outputs in NCHW (PyTorch convention).

    params = (w1, cb1, g1, b1, w2, cb2, g2, b2).  Conv biases cb1/cb2 are
    accepted but not applied: a bias followed by training-mode BatchNorm is
    cancelled exactly by the mean subtraction.
    """
    (w1, _cb1, g1, b1, w2, _cb2, g2, b2) = params
    N, Cin, H, W = x_nchw.shape
    Cout = w1.shape[0]
    S, Sp = H * W, (H // 2) * (W // 2)
    assert H % 2 == 0 and W % 2 == 0, "pooling path assumes even spatial dims"
    # TODO(synk): odd H/W with ceil_mode=True needs a -inf edge pad in the pool.

    f32 = jnp.float32
    x = x_nchw.astype(f32).reshape(N, Cin, S)      # NCHW-flat: free reshape, no transpose

    w1t = _conv_weight_tapmajor(w1)                 # (9*Cout, Cin)
    w2t = _conv_weight_tapmajor(w2)                 # (9*Cout, Cout)
    mask = _tap_masks(H, W)                         # (9, 1, S)
    sel = _pool_select(H, W)                        # (S, Sp)

    cparams = pltpu.CompilerParams(
        dimension_semantics=("parallel",),          # batch axis across TCs
        vmem_limit_bytes=_vmem_limit_bytes())

    def per_n(shape):                               # one batch sample per grid step
        nd = len(shape)
        return pl.BlockSpec((1,) + tuple(shape[1:]), lambda i: (i,) + (0,) * (nd - 1))

    def full(shape):                                # whole (small) array resident
        nd = len(shape)
        return pl.BlockSpec(tuple(shape), lambda i: (0,) * nd)

    count = float(N * S)

    # ---- pass 1: conv1 -> y1 (pre-BN) + per-sample channel stats -------------
    y1, s1, sq1 = pl.pallas_call(
        functools.partial(_conv1_kernel, width=W),
        grid=(N,),
        in_specs=[per_n((N, Cin, S)), full(w1t.shape), full(mask.shape)],
        out_specs=(per_n((N, Cout, S)), per_n((N, Cout, 1)), per_n((N, Cout, 1))),
        out_shape=(jax.ShapeDtypeStruct((N, Cout, S), inter_dtype),
                   jax.ShapeDtypeStruct((N, Cout, 1), f32),
                   jax.ShapeDtypeStruct((N, Cout, 1), f32)),
        compiler_params=cparams,
    )(x, w1t, mask)

    sc1, sh1 = _bn_scale_shift(s1, sq1, g1, b1, count)

    # ---- pass 2: BN1 + ReLU + conv2 -> y2 (pre-BN) + stats --------------------
    y2, s2, sq2 = pl.pallas_call(
        functools.partial(_bn_relu_conv2_kernel, width=W),
        grid=(N,),
        in_specs=[per_n((N, Cout, S)), full((Cout, 1)), full((Cout, 1)),
                  full(w2t.shape), full(mask.shape)],
        out_specs=(per_n((N, Cout, S)), per_n((N, Cout, 1)), per_n((N, Cout, 1))),
        out_shape=(jax.ShapeDtypeStruct((N, Cout, S), inter_dtype),
                   jax.ShapeDtypeStruct((N, Cout, 1), f32),
                   jax.ShapeDtypeStruct((N, Cout, 1), f32)),
        compiler_params=cparams,
    )(y1, sc1, sh1, w2t, mask)

    sc2, sh2 = _bn_scale_shift(s2, sq2, g2, b2, count)

    # ---- pass 3: BN2 + ReLU + MaxPool2d(2) ------------------------------------
    x_out, pool = pl.pallas_call(
        functools.partial(_bn_relu_pool_kernel, width=W),
        grid=(N,),
        in_specs=[per_n((N, Cout, S)), full((Cout, 1)), full((Cout, 1)),
                  full(sel.shape)],
        out_specs=(per_n((N, Cout, S)), per_n((N, Cout, Sp))),
        out_shape=(jax.ShapeDtypeStruct((N, Cout, S), f32),
                   jax.ShapeDtypeStruct((N, Cout, Sp), f32)),
        compiler_params=cparams,
    )(y2, sc2, sh2, sel)

    return (x_out.reshape(N, Cout, H, W),
            pool.reshape(N, Cout, H // 2, W // 2))


# --------------------------------------------------------------------------- #
# Pure-JAX reference (NCHW), matching PyTorch training-mode BN semantics
# --------------------------------------------------------------------------- #
def _ref_forward(x, params):
    (w1, cb1, g1, b1, w2, cb2, g2, b2) = params

    def conv(x, w, b):
        y = jax.lax.conv_general_dilated(
            x, w, window_strides=(1, 1), padding="SAME",
            dimension_numbers=("NCHW", "OIHW", "NCHW"))
        return y + b[None, :, None, None]

    def bn_relu(x, g, bta):
        m = jnp.mean(x, axis=(0, 2, 3), keepdims=True)
        v = jnp.mean((x - m) ** 2, axis=(0, 2, 3), keepdims=True)
        y = (x - m) * jax.lax.rsqrt(v + BN_EPS) * g[None, :, None, None] \
            + bta[None, :, None, None]
        return jnp.maximum(y, 0.0)

    y = bn_relu(conv(x, w1, cb1), g1, b1)
    y = bn_relu(conv(y, w2, cb2), g2, b2)
    pooled = jax.lax.reduce_window(y, -jnp.inf, jax.lax.max,
                                   (1, 1, 2, 2), (1, 1, 2, 2), "VALID")
    return y, pooled


if __name__ == "__main__":
    N, Cin, Cout, H, W = 2, 4, 8, 16, 16
    key = jax.random.PRNGKey(0)
    ks = jax.random.split(key, 9)

    # Deterministic synthetic parameters (shapes per the module's __init__)
    w1 = 0.1 * jax.random.normal(ks[0], (Cout, Cin, 3, 3), jnp.float32)
    cb1 = 0.1 * jax.random.normal(ks[1], (Cout,), jnp.float32)
    g1 = 1.0 + 0.1 * jax.random.normal(ks[2], (Cout,), jnp.float32)
    b1 = 0.1 * jax.random.normal(ks[3], (Cout,), jnp.float32)
    w2 = 0.1 * jax.random.normal(ks[4], (Cout, Cout, 3, 3), jnp.float32)
    cb2 = 0.1 * jax.random.normal(ks[5], (Cout,), jnp.float32)
    g2 = 1.0 + 0.1 * jax.random.normal(ks[6], (Cout,), jnp.float32)
    b2 = 0.1 * jax.random.normal(ks[7], (Cout,), jnp.float32)
    x = jax.random.normal(ks[8], (N, Cin, H, W), jnp.float32)
    params = (w1, cb1, g1, b1, w2, cb2, g2, b2)

    ref_x, ref_p = _ref_forward(x, params)

    # Strict check: f32 intermediates validate the kernel math (conv taps, BN
    # stats/folding, pooling) against the PyTorch-equivalent reference.
    x32, p32 = jax.block_until_ready(
        encoder_forward(x, params, inter_dtype=jnp.float32))
    assert x32.shape == (N, Cout, H, W)
    assert p32.shape == (N, Cout, H // 2, W // 2)
    assert bool(jnp.allclose(x32, ref_x, atol=5e-4, rtol=5e-4))
    assert bool(jnp.allclose(p32, ref_p, atol=5e-4, rtol=5e-4))

    # Default fast path: bf16 y1/y2 intermediates (halves the HBM traffic of the
    # mem-bound passes); looser tolerance accounts for the bf16 rounding.
    xbf, pbf = jax.block_until_ready(encoder_forward(x, params))
    assert bool(jnp.allclose(xbf, ref_x, atol=5e-2, rtol=5e-2))
    assert bool(jnp.allclose(pbf, ref_p, atol=5e-2, rtol=5e-2))

    print("KERNEL_OK")
</pallas_src>

<mosaic_0001>
module attributes {stable_mosaic.version = 11 : i64} {
  func.func @_conv1_kernel(%arg0: i32, %arg1: memref<1x4x256xf32, #tpu.memory_space<vmem>>, %arg2: memref<72x4xf32, #tpu.memory_space<vmem>>, %arg3: memref<9x1x256xf32, #tpu.memory_space<vmem>>, %arg4: memref<1x8x256xf32, #tpu.memory_space<vmem>>, %arg5: memref<1x8x1xf32, #tpu.memory_space<vmem>>, %arg6: memref<1x8x1xf32, #tpu.memory_space<vmem>>) attributes {dimension_semantics = [#tpu.dimension_semantics<parallel>], iteration_bounds = array<i64: 2>, scalar_prefetch = 0 : i64, scratch_operands = 0 : i64, tpu.core_type = #tpu.core_type<tc>, window_params = [{transform_indices = @transform_0, window_bounds = array<i64: 1, 4, 256>}, {pipeline_mode = #tpu.pipeline_mode<synchronous>, transform_indices = @transform_1, window_bounds = array<i64: 72, 4>}, {pipeline_mode = #tpu.pipeline_mode<synchronous>, transform_indices = @transform_2, window_bounds = array<i64: 9, 1, 256>}, {transform_indices = @transform_3, window_bounds = array<i64: 1, 8, 256>}, {transform_indices = @transform_4, window_bounds = array<i64: 1, 8, 1>}, {transform_indices = @transform_5, window_bounds = array<i64: 1, 8, 1>}]} {
    %c0 = arith.constant 0 : index
    %c0_0 = arith.constant 0 : index
    %c0_1 = arith.constant 0 : index
    %0 = vector.load %arg1[%c0, %c0_0, %c0_1] : memref<1x4x256xf32, #tpu.memory_space<vmem>>, vector<1x4x256xf32>
    %1 = vector.shape_cast %0 : vector<1x4x256xf32> to vector<4x256xf32>
    %c0_2 = arith.constant 0 : index
    %c0_3 = arith.constant 0 : index
    %2 = vector.load %arg2[%c0_2, %c0_3] : memref<72x4xf32, #tpu.memory_space<vmem>>, vector<72x4xf32>
    %cst = arith.constant dense<0.000000e+00> : vector<72x256xf32>
    %3 = tpu.matmul %2, %1, %cst {dimension_numbers = #tpu.dot_dimension_numbers<[1], [0], [0], [1], [0, 0, 1, 1], [], []>} : vector<72x4xf32>, vector<4x256xf32>, vector<72x256xf32> -> vector<72x256xf32>
    %cst_4 = arith.constant 0.000000e+00 : f32
    %4 = vector.broadcast %cst_4 : f32 to vector<8x256xf32>
    %5 = vector.extract_strided_slice %3 {offsets = [0, 0], sizes = [8, 256], strides = [1, 1]} : vector<72x256xf32> to vector<8x256xf32>
    %6 = vector.extract_strided_slice %5 {offsets = [0, 239], sizes = [8, 17], strides = [1, 1]} : vector<8x256xf32> to vector<8x17xf32>
    %7 = vector.extract_strided_slice %5 {offsets = [0, 0], sizes = [8, 239], strides = [1, 1]} : vector<8x256xf32> to vector<8x239xf32>
    %8 = tpu.concatenate %6, %7 in 1 : vector<8x17xf32>, vector<8x239xf32> -> vector<8x256xf32>
    %c0_5 = arith.constant 0 : index
    %c0_6 = arith.constant 0 : index
    %c0_7 = arith.constant 0 : index
    %9 = vector.load %arg3[%c0_5, %c0_6, %c0_7] : memref<9x1x256xf32, #tpu.memory_space<vmem>>, vector<1x1x256xf32>
    %10 = vector.shape_cast %9 : vector<1x1x256xf32> to vector<1x256xf32>
    %11 = vector.broadcast %10 : vector<1x256xf32> to vector<8x256xf32>
    %12 = arith.mulf %8, %11 : vector<8x256xf32>
    %13 = arith.addf %4, %12 : vector<8x256xf32>
    %14 = vector.extract_strided_slice %3 {offsets = [8, 0], sizes = [8, 256], strides = [1, 1]} : vector<72x256xf32> to vector<8x256xf32>
    %15 = vector.extract_strided_slice %14 {offsets = [0, 240], sizes = [8, 16], strides = [1, 1]} : vector<8x256xf32> to vector<8x16xf32>
    %16 = vector.extract_strided_slice %14 {offsets = [0, 0], sizes = [8, 240], strides = [1, 1]} : vector<8x256xf32> to vector<8x240xf32>
    %17 = tpu.concatenate %15, %16 in 1 : vector<8x16xf32>, vector<8x240xf32> -> vector<8x256xf32>
    %c1 = arith.constant 1 : index
    %c0_8 = arith.constant 0 : index
    %c0_9 = arith.constant 0 : index
    %18 = vector.load %arg3[%c1, %c0_8, %c0_9] : memref<9x1x256xf32, #tpu.memory_space<vmem>>, vector<1x1x256xf32>
    %19 = vector.shape_cast %18 : vector<1x1x256xf32> to vector<1x256xf32>
    %20 = vector.broadcast %19 : vector<1x256xf32> to vector<8x256xf32>
    %21 = arith.mulf %17, %20 : vector<8x256xf32>
    %22 = arith.addf %13, %21 : vector<8x256xf32>
    %23 = vector.extract_strided_slice %3 {offsets = [16, 0], sizes = [8, 256], strides = [1, 1]} : vector<72x256xf32> to vector<8x256xf32>
    %24 = vector.extract_strided_slice %23 {offsets = [0, 241], sizes = [8, 15], strides = [1, 1]} : vector<8x256xf32> to vector<8x15xf32>
    %25 = vector.extract_strided_slice %23 {offsets = [0, 0], sizes = [8, 241], strides = [1, 1]} : vector<8x256xf32> to vector<8x241xf32>
    %26 = tpu.concatenate %24, %25 in 1 : vector<8x15xf32>, vector<8x241xf32> -> vector<8x256xf32>
    %c2 = arith.constant 2 : index
    %c0_10 = arith.constant 0 : index
    %c0_11 = arith.constant 0 : index
    %27 = vector.load %arg3[%c2, %c0_10, %c0_11] : memref<9x1x256xf32, #tpu.memory_space<vmem>>, vector<1x1x256xf32>
    %28 = vector.shape_cast %27 : vector<1x1x256xf32> to vector<1x256xf32>
    %29 = vector.broadcast %28 : vector<1x256xf32> to vector<8x256xf32>
    %30 = arith.mulf %26, %29 : vector<8x256xf32>
    %31 = arith.addf %22, %30 : vector<8x256xf32>
    %32 = vector.extract_strided_slice %3 {offsets = [24, 0], sizes = [8, 256], strides = [1, 1]} : vector<72x256xf32> to vector<8x256xf32>
    %33 = vector.extract_strided_slice %32 {offsets = [0, 255], sizes = [8, 1], strides = [1, 1]} : vector<8x256xf32> to vector<8x1xf32>
    %34 = vector.extract_strided_slice %32 {offsets = [0, 0], sizes = [8, 255], strides = [1, 1]} : vector<8x256xf32> to vector<8x255xf32>
    %35 = tpu.concatenate %33, %34 in 1 : vector<8x1xf32>, vector<8x255xf32> -> vector<8x256xf32>
    %c3 = arith.constant 3 : index
    %c0_12 = arith.constant 0 : index
    %c0_13 = arith.constant 0 : index
    %36 = vector.load %arg3[%c3, %c0_12, %c0_13] : memref<9x1x256xf32, #tpu.memory_space<vmem>>, vector<1x1x256xf32>
    %37 = vector.shape_cast %36 : vector<1x1x256xf32> to vector<1x256xf32>
    %38 = vector.broadcast %37 : vector<1x256xf32> to vector<8x256xf32>
    %39 = arith.mulf %35, %38 : vector<8x256xf32>
    %40 = arith.addf %31, %39 : vector<8x256xf32>
    %41 = vector.extract_strided_slice %3 {offsets = [32, 0], sizes = [8, 256], strides = [1, 1]} : vector<72x256xf32> to vector<8x256xf32>
    %42 = arith.addf %40, %41 : vector<8x256xf32>
    %43 = vector.extract_strided_slice %3 {offsets = [40, 0], sizes = [8, 256], strides = [1, 1]} : vector<72x256xf32> to vector<8x256xf32>
    %44 = vector.extract_strided_slice %43 {offsets = [0, 1], sizes = [8, 255], strides = [1, 1]} : vector<8x256xf32> to vector<8x255xf32>
    %45 = vector.extract_strided_slice %43 {offsets = [0, 0], sizes = [8, 1], strides = [1, 1]} : vector<8x256xf32> to vector<8x1xf32>
    %46 = tpu.concatenate %44, %45 in 1 : vector<8x255xf32>, vector<8x1xf32> -> vector<8x256xf32>
    %c5 = arith.constant 5 : index
    %c0_14 = arith.constant 0 : index
    %c0_15 = arith.constant 0 : index
    %47 = vector.load %arg3[%c5, %c0_14, %c0_15] : memref<9x1x256xf32, #tpu.memory_space<vmem>>, vector<1x1x256xf32>
    %48 = vector.shape_cast %47 : vector<1x1x256xf32> to vector<1x256xf32>
    %49 = vector.broadcast %48 : vector<1x256xf32> to vector<8x256xf32>
    %50 = arith.mulf %46, %49 : vector<8x256xf32>
    %51 = arith.addf %42, %50 : vector<8x256xf32>
    %52 = vector.extract_strided_slice %3 {offsets = [48, 0], sizes = [8, 256], strides = [1, 1]} : vector<72x256xf32> to vector<8x256xf32>
    %53 = vector.extract_strided_slice %52 {offsets = [0, 15], sizes = [8, 241], strides = [1, 1]} : vector<8x256xf32> to vector<8x241xf32>
    %54 = vector.extract_strided_slice %52 {offsets = [0, 0], sizes = [8, 15], strides = [1, 1]} : vector<8x256xf32> to vector<8x15xf32>
    %55 = tpu.concatenate %53, %54 in 1 : vector<8x241xf32>, vector<8x15xf32> -> vector<8x256xf32>
    %c6 = arith.constant 6 : index
    %c0_16 = arith.constant 0 : index
    %c0_17 = arith.constant 0 : index
    %56 = vector.load %arg3[%c6, %c0_16, %c0_17] : memref<9x1x256xf32, #tpu.memory_space<vmem>>, vector<1x1x256xf32>
    %57 = vector.shape_cast %56 : vector<1x1x256xf32> to vector<1x256xf32>
    %58 = vector.broadcast %57 : vector<1x256xf32> to vector<8x256xf32>
    %59 = arith.mulf %55, %58 : vector<8x256xf32>
    %60 = arith.addf %51, %59 : vector<8x256xf32>
    %61 = vector.extract_strided_slice %3 {offsets = [56, 0], sizes = [8, 256], strides = [1, 1]} : vector<72x256xf32> to vector<8x256xf32>
    %62 = vector.extract_strided_slice %61 {offsets = [0, 16], sizes = [8, 240], strides = [1, 1]} : vector<8x256xf32> to vector<8x240xf32>
    %63 = vector.extract_strided_slice %61 {offsets = [0, 0], sizes = [8, 16], strides = [1, 1]} : vector<8x256xf32> to vector<8x16xf32>
    %64 = tpu.concatenate %62, %63 in 1 : vector<8x240xf32>, vector<8x16xf32> -> vector<8x256xf32>
    %c7 = arith.constant 7 : index
    %c0_18 = arith.constant 0 : index
    %c0_19 = arith.constant 0 : index
    %65 = vector.load %arg3[%c7, %c0_18, %c0_19] : memref<9x1x256xf32, #tpu.memory_space<vmem>>, vector<1x1x256xf32>
    %66 = vector.shape_cast %65 : vector<1x1x256xf32> to vector<1x256xf32>
    %67 = vector.broadcast %66 : vector<1x256xf32> to vector<8x256xf32>
    %68 = arith.mulf %64, %67 : vector<8x256xf32>
    %69 = arith.addf %60, %68 : vector<8x256xf32>
    %70 = vector.extract_strided_slice %3 {offsets = [64, 0], sizes = [8, 256], strides = [1, 1]} : vector<72x256xf32> to vector<8x256xf32>
    %71 = vector.extract_strided_slice %70 {offsets = [0, 17], sizes = [8, 239], strides = [1, 1]} : vector<8x256xf32> to vector<8x239xf32>
    %72 = vector.extract_strided_slice %70 {offsets = [0, 0], sizes = [8, 17], strides = [1, 1]} : vector<8x256xf32> to vector<8x17xf32>
    %73 = tpu.concatenate %71, %72 in 1 : vector<8x239xf32>, vector<8x17xf32> -> vector<8x256xf32>
    %c8 = arith.constant 8 : index
    %c0_20 = arith.constant 0 : index
    %c0_21 = arith.constant 0 : index
    %74 = vector.load %arg3[%c8, %c0_20, %c0_21] : memref<9x1x256xf32, #tpu.memory_space<vmem>>, vector<1x1x256xf32>
    %75 = vector.shape_cast %74 : vector<1x1x256xf32> to vector<1x256xf32>
    %76 = vector.broadcast %75 : vector<1x256xf32> to vector<8x256xf32>
    %77 = arith.mulf %73, %76 : vector<8x256xf32>
    %78 = arith.addf %69, %77 : vector<8x256xf32>
    %c0_22 = arith.constant 0 : index
    %c0_23 = arith.constant 0 : index
    %c0_24 = arith.constant 0 : index
    %79 = vector.load %arg4[%c0_22, %c0_23, %c0_24] : memref<1x8x256xf32, #tpu.memory_space<vmem>>, vector<1x8x256xf32>
    %80 = vector.shape_cast %79 : vector<1x8x256xf32> to vector<8x256xf32>
    %81 = vector.shape_cast %78 : vector<8x256xf32> to vector<1x8x256xf32>
    tpu.vector_store %arg4[%c0_22, %c0_23, %c0_24], %81 {strides = array<i32>} : memref<1x8x256xf32, #tpu.memory_space<vmem>>, vector<1x8x256xf32>,
    %cst_25 = arith.constant dense<0.000000e+00> : vector<8xf32>
    %82 = vector.multi_reduction <add>, %78, %cst_25 [1] : vector<8x256xf32> to vector<8xf32>
    %83 = vector.shape_cast %82 : vector<8xf32> to vector<8x1xf32>
    %c0_26 = arith.constant 0 : index
    %c0_27 = arith.constant 0 : index
    %c0_28 = arith.constant 0 : index
    %84 = vector.load %arg5[%c0_26, %c0_27, %c0_28] : memref<1x8x1xf32, #tpu.memory_space<vmem>>, vector<1x8x1xf32>
    %85 = vector.shape_cast %84 : vector<1x8x1xf32> to vector<8x1xf32>
    %86 = vector.shape_cast %83 : vector<8x1xf32> to vector<1x8x1xf32>
    tpu.vector_store %arg5[%c0_26, %c0_27, %c0_28], %86 {strides = array<i32>} : memref<1x8x1xf32, #tpu.memory_space<vmem>>, vector<1x8x1xf32>,
    %87 = arith.mulf %78, %78 : vector<8x256xf32>
    %cst_29 = arith.constant dense<0.000000e+00> : vector<8xf32>
    %88 = vector.multi_reduction <add>, %87, %cst_29 [1] : vector<8x256xf32> to vector<8xf32>
    %89 = vector.shape_cast %88 : vector<8xf32> to vector<8x1xf32>
    %c0_30 = arith.constant 0 : index
    %c0_31 = arith.constant 0 : index
    %c0_32 = arith.constant 0 : index
    %90 = vector.load %arg6[%c0_30, %c0_31, %c0_32] : memref<1x8x1xf32, #tpu.memory_space<vmem>>, vector<1x8x1xf32>
    %91 = vector.shape_cast %90 : vector<1x8x1xf32> to vector<8x1xf32>
    %92 = vector.shape_cast %89 : vector<8x1xf32> to vector<1x8x1xf32>
    tpu.vector_store %arg6[%c0_30, %c0_31, %c0_32], %92 {strides = array<i32>} : memref<1x8x1xf32, #tpu.memory_space<vmem>>, vector<1x8x1xf32>,
    return
  }
  func.func @transform_0(%arg0: i32) -> (i32, i32, i32) {
    %c0_i32 = arith.constant 0 : i32
    %c0_i32_0 = arith.constant 0 : i32
    %c0_i32_1 = arith.constant 0 : i32
    return %arg0, %c0_i32, %c0_i32_0 : i32, i32, i32
  }
  func.func @transform_1(%arg0: i32) -> (i32, i32) {
    %c0_i32 = arith.constant 0 : i32
    %c0_i32_0 = arith.constant 0 : i32
    %c0_i32_1 = arith.constant 0 : i32
    return %c0_i32, %c0_i32_0 : i32, i32
  }
  func.func @transform_2(%arg0: i32) -> (i32, i32, i32) {
    %c0_i32 = arith.constant 0 : i32
    %c0_i32_0 = arith.constant 0 : i32
    %c0_i32_1 = arith.constant 0 : i32
    %c0_i32_2 = arith.constant 0 : i32
    return %c0_i32, %c0_i32_0, %c0_i32_1 : i32, i32, i32
  }
  func.func @transform_3(%arg0: i32) -> (i32, i32, i32) {
    %c0_i32 = arith.constant 0 : i32
    %c0_i32_0 = arith.constant 0 : i32
    %c0_i32_1 = arith.constant 0 : i32
    return %arg0, %c0_i32, %c0_i32_0 : i32, i32, i32
  }
  func.func @transform_4(%arg0: i32) -> (i32, i32, i32) {
    %c0_i32 = arith.constant 0 : i32
    %c0_i32_0 = arith.constant 0 : i32
    %c0_i32_1 = arith.constant 0 : i32
    return %arg0, %c0_i32, %c0_i32_0 : i32, i32, i32
  }
  func.func @transform_5(%arg0: i32) -> (i32, i32, i32) {
    %c0_i32 = arith.constant 0 : i32
    %c0_i32_0 = arith.constant 0 : i32
    %c0_i32_1 = arith.constant 0 : i32
    return %arg0, %c0_i32, %c0_i32_0 : i32, i32, i32
  }
}

</mosaic_0001>

<llo_original>
// kernel: tpu_custom_call.1
$region0: #{tpu_custom_call.1}
  #allocation0 [shape = 'u32[]', space=smem, size = 0x4, offset = 0x4, fixed_abs, tag = 'smem constant byte address 0x4 - core index']
  #allocation1 [shape = 'u32[72,128]{1,0:T(1,128)}', space=vmem, size = 0x9000, scoped, tag = 'internal scratch']
  %s0 = inlined_call_operand.vmem [shape: f32[2,4,256], index: 0, kind: input, shape index: {}]
  %s1 = inlined_call_operand.vmem [shape: f32[72,4], index: 1, kind: input, shape index: {}]
  %s2 = inlined_call_operand.vmem [shape: f32[9,1,256], index: 2, kind: input, shape index: {}]
  %s3 = inlined_call_operand.hbm [shape: f32[2,8,256], index: 3, kind: output, shape index: {0}]
  %s4 = inlined_call_operand.vmem [shape: f32[2,8,1], index: 4, kind: output, shape index: {1}]
  %s5 = inlined_call_operand.vmem [shape: f32[2,8,1], index: 5, kind: output, shape index: {2}]
  %6 = xla_tuple %s3, %s4, %s5
  %s7 = sld [smem:[#allocation0]]
  $region61: #{tpu_custom_call.1} parent=0
    _
  %s9 = ssub.s32 1, %s7
  %s10 = scalar_select 0, %s9, %s7
  $region1: #{tpu_custom_call.1} parent=0
    #allocation2 [shape = 'u8[16384]{0}', space=vmem, size = 0x4000, scoped, tag = 'output window, operand 0']
    #allocation3 [shape = 's32[2]{0}', space=sflag, size = 0x8, scoped, tag = 'scoped memory for tpu_custom_call.1']
    %11 = vsyncpa [#allocation3], 0
    %s12 = scalar_lea.sflag [#allocation3], 1
    %13 = vsyncpa %s12, 0
    loop: start=0, step=1, limit=4
    $region2: #{tpu_custom_call.1} parent=1 // loop_pre_header
      _
    $region3: #{tpu_custom_call.1} parent=1 // loop_header
      %s15 = sphi 0, %s19
      %p16 = scmp.ge.s32.totalorder %s15, 4
      %s25 = sphi 0, %s27
      %s28 = sphi 0, %s25
      %s29 = sphi 0, %s28
      %s45 = sphi 0, %s29
      %s49 = sphi 0, %s49
      %s51 = sphi 0, %s49
      %s52 = sphi 0, %s51
      %s66 = sphi 0, %s52
      %s70 = sphi 0, %s70
      %s72 = sphi 0, %s70
      %s73 = sphi 0, %s72
      %s87 = sphi 0, %s73
      %s93 = sphi 0, %s95
      %s96 = sphi 0, %s93
      %s97 = sphi 0, %s96
      %s113 = sphi 0, %s97
      %s119 = sphi 0, %s121
      %s122 = sphi 0, %s119
      %s123 = sphi 0, %s122
      %s139 = sphi 0, %s123
      %s145 = sphi 0, %s147
      %s148 = sphi 0, %s145
      %s149 = sphi 0, %s148
      %s165 = sphi 0, %s149
    $region4: #{tpu_custom_call.1} parent=1 // loop_header_branch
      %18 = sbr.rel (%p16) target = $region8
    $region5: #{tpu_custom_call.1} parent=1 // loop_body
      %s20 = ssub.s32 %s15, 1
      %s21 = ssub.s32 %s15, 2
      %s22 = sadd.s32 %s15, 1
      %s23 = ssub.s32 %s15, %s22
      %p24 = scmp.eq.s32.totalorder %s23, 0
      %s26 = sadd.s32 %s25, 1
      %s27 = scalar_select %p24, %s25, %s26
      %p30 = pneg %p24
      %p31 = scmp.eq.s32.totalorder %s15, 1
      %p32 = por %p30, %p31
      %p33 = scmp.ne.s32.totalorder %s25, %s28
      %p34 = scmp.eq.s32.totalorder %s15, 0
      %p35 = por %p33, %p34
      %p36 = scmp.ne.s32.totalorder %s25, %s28
      %p37 = scmp.eq.s32.totalorder %s20, 1
      %p38 = por %p36, %p37
      %p39 = scmp.ne.s32.totalorder %s28, %s29
      %p40 = scmp.eq.s32.totalorder %s20, 0
      %p41 = por %p39, %p40
      %p42 = scmp.ne.s32.totalorder %s28, %s29
      %p43 = scmp.eq.s32.totalorder %s21, 1
      %p44 = por %p42, %p43
      %p46 = scmp.ne.s32.totalorder %s29, %s45
      %p47 = scmp.eq.s32.totalorder %s21, 0
      %p48 = por %p46, %p47
      %s50 = sadd.s32 %s49, 1
      %p53 = scmp.eq.s32.totalorder %s15, 1
      %p54 = scmp.ne.s32.totalorder %s49, %s51
      %p55 = scmp.eq.s32.totalorder %s15, 0
      %p56 = por %p54, %p55
      %p57 = scmp.ne.s32.totalorder %s49, %s51
      %p58 = scmp.eq.s32.totalorder %s20, 1
      %p59 = por %p57, %p58
      %p60 = scmp.ne.s32.totalorder %s51, %s52
      %p61 = scmp.eq.s32.totalorder %s20, 0
      %p62 = por %p60, %p61
      %p63 = scmp.ne.s32.totalorder %s51, %s52
      %p64 = scmp.eq.s32.totalorder %s21, 1
      %p65 = por %p63, %p64
      %p67 = scmp.ne.s32.totalorder %s52, %s66
      %p68 = scmp.eq.s32.totalorder %s21, 0
      %p69 = por %p67, %p68
      %s71 = sadd.s32 %s70, 1
      %p74 = scmp.eq.s32.totalorder %s15, 1
      %p75 = scmp.ne.s32.totalorder %s70, %s72
      %p76 = scmp.eq.s32.totalorder %s15, 0
      %p77 = por %p75, %p76
      %p78 = scmp.ne.s32.totalorder %s70, %s72
      %p79 = scmp.eq.s32.totalorder %s20, 1
      %p80 = por %p78, %p79
      %p81 = scmp.ne.s32.totalorder %s72, %s73
      %p82 = scmp.eq.s32.totalorder %s20, 0
      %p83 = por %p81, %p82
      %p84 = scmp.ne.s32.totalorder %s72, %s73
      %p85 = scmp.eq.s32.totalorder %s21, 1
      %p86 = por %p84, %p85
      %p88 = scmp.ne.s32.totalorder %s73, %s87
      %p89 = scmp.eq.s32.totalorder %s21, 0
      %p90 = por %p88, %p89
      %s91 = ssub.s32 %s15, %s22
      %p92 = scmp.eq.s32.totalorder %s91, 0
      %s94 = sadd.s32 %s93, 1
      %s95 = scalar_select %p92, %s93, %s94
      %p98 = pneg %p92
      %p99 = scmp.eq.s32.totalorder %s15, 1
      %p100 = por %p98, %p99
      %p101 = scmp.ne.s32.totalorder %s93, %s96
      %p102 = scmp.eq.s32.totalorder %s15, 0
      %p103 = por %p101, %p102
      %p104 = scmp.ne.s32.totalorder %s93, %s96
      %p105 = scmp.eq.s32.totalorder %s20, 1
      %p106 = por %p104, %p105
      %p107 = scmp.ne.s32.totalorder %s96, %s97
      %p108 = scmp.eq.s32.totalorder %s20, 0
      %p109 = por %p107, %p108
      %p110 = scmp.ne.s32.totalorder %s96, %s97
      %p111 = scmp.eq.s32.totalorder %s21, 1
      %p112 = por %p110, %p111
      %p114 = scmp.ne.s32.totalorder %s97, %s113
      %p115 = scmp.eq.s32.totalorder %s21, 0
      %p116 = por %p114, %p115
      %s117 = ssub.s32 %s15, %s22
      %p118 = scmp.eq.s32.totalorder %s117, 0
      %s120 = sadd.s32 %s119, 1
      %s121 = scalar_select %p118, %s119, %s120
      %p124 = pneg %p118
      %p125 = scmp.eq.s32.totalorder %s15, 1
      %p126 = por %p124, %p125
      %p127 = scmp.ne.s32.totalorder %s119, %s122
      %p128 = scmp.eq.s32.totalorder %s15, 0
      %p129 = por %p127, %p128
      %p130 = scmp.ne.s32.totalorder %s119, %s122
      %p131 = scmp.eq.s32.totalorder %s20, 1
      %p132 = por %p130, %p131
      %p133 = scmp.ne.s32.totalorder %s122, %s123
      %p134 = scmp.eq.s32.totalorder %s20, 0
      %p135 = por %p133, %p134
      %p136 = scmp.ne.s32.totalorder %s122, %s123
      %p137 = scmp.eq.s32.totalorder %s21, 1
      %p138 = por %p136, %p137
      %p140 = scmp.ne.s32.totalorder %s123, %s139
      %p141 = scmp.eq.s32.totalorder %s21, 0
      %p142 = por %p140, %p141
      %s143 = ssub.s32 %s15, %s22
      %p144 = scmp.eq.s32.totalorder %s143, 0
      %s146 = sadd.s32 %s145, 1
      %s147 = scalar_select %p144, %s145, %s146
      %p150 = pneg %p144
      %p151 = scmp.eq.s32.totalorder %s15, 1
      %p152 = por %p150, %p151
      %p153 = scmp.ne.s32.totalorder %s145, %s148
      %p154 = scmp.eq.s32.totalorder %s15, 0
      %p155 = por %p153, %p154
      %p156 = scmp.ne.s32.totalorder %s145, %s148
      %p157 = scmp.eq.s32.totalorder %s20, 1
      %p158 = por %p156, %p157
      %p159 = scmp.ne.s32.totalorder %s148, %s149
      %p160 = scmp.eq.s32.totalorder %s20, 0
      %p161 = por %p159, %p160
      %p162 = scmp.ne.s32.totalorder %s148, %s149
      %p163 = scmp.eq.s32.totalorder %s21, 1
      %p164 = por %p162, %p163
      %p166 = scmp.ne.s32.totalorder %s149, %s165
      %p167 = scmp.eq.s32.totalorder %s21, 0
      %p168 = por %p166, %p167
      %p169 = scmp.le.s32.totalorder 1, %s15
      %p170 = scmp.lt.s32.totalorder %s15, 3
      %p171 = pnand %p169, %p170
      %p172 = pneg %p171
      // Predicated region
      $region9: #{tpu_custom_call.1} parent=5 // pred_check
        _
      $region10: #{tpu_custom_call.1} parent=5 // pred_check_branch
        %174 = sbr.rel (%p171) target = $region12
      $region11: #{tpu_custom_call.1} parent=5 // pred_region
        %s175 = ssub.s32 %s15, 1
        // Predicated region
        $region13: #{tpu_custom_call.1} parent=11 // pred_check
          %p176 = pneg %p62
        $region14: #{tpu_custom_call.1} parent=11 // pred_check_branch
          %178 = sbr.rel (%p176) target = $region16
        $region15: #{tpu_custom_call.1} parent=11 // pred_region
          _
        $region16: #{tpu_custom_call.1} parent=11 // pred_fallthru
          _
        // Predicated region
        $region17: #{tpu_custom_call.1} parent=11 // pred_check
          %p179 = pneg %p83
        $region18: #{tpu_custom_call.1} parent=11 // pred_check_branch
          %181 = sbr.rel (%p179) target = $region20
        $region19: #{tpu_custom_call.1} parent=11 // pred_region
          _
        $region20: #{tpu_custom_call.1} parent=11 // pred_fallthru
          _
      $region12: #{tpu_custom_call.1} parent=5 // pred_fallthru
        _
      %p182 = scmp.lt.s32.totalorder %s15, 2
      // Predicated region
      $region21: #{tpu_custom_call.1} parent=5 // pred_check
        %p183 = pneg %p182
      $region22: #{tpu_custom_call.1} parent=5 // pred_check_branch
        %185 = sbr.rel (%p183) target = $region24
      $region23: #{tpu_custom_call.1} parent=5 // pred_region
        // Predicated region
        $region25: #{tpu_custom_call.1} parent=23 // pred_check
          %p186 = pneg %p35
        $region26: #{tpu_custom_call.1} parent=23 // pred_check_branch
          %188 = sbr.rel (%p186) target = $region28
        $region27: #{tpu_custom_call.1} parent=23 // pred_region
          %p189 = scmp.lt.s32.totalorder %s15, 1
          %s190 = scalar_select %p189, %s15, 1
          %s191 = smul.addr %s190, 2
          %s192 = smul.addr %s191, 4
          %s193 = scalar_lea.vmem %s0, %s192
        $region28: #{tpu_custom_call.1} parent=23 // pred_fallthru
          _
      $region24: #{tpu_custom_call.1} parent=5 // pred_fallthru
        _
      %p194 = scmp.le.s32.totalorder 1, %s15
      %p195 = scmp.lt.s32.totalorder %s15, 3
      %p196 = pnand %p194, %p195
      %p197 = pneg %p196
      // Predicated region
      $region29: #{tpu_custom_call.1} parent=5 // pred_check
        _
      $region30: #{tpu_custom_call.1} parent=5 // pred_check_branch
        %199 = sbr.rel (%p196) target = $region32
      $region31: #{tpu_custom_call.1} parent=5 // pred_region
        %s200 = ssub.s32 %s15, 1
        %p201 = scmp.lt.s32.totalorder %s20, 1
        %s202 = scalar_select %p201, %s20, 1
        %s203 = smul.addr %s202, 2
        %s204 = smul.addr %s203, 4
        %s205 = scalar_lea.vmem %s0, %s204
        %p206 = pneg %p41
        %p207 = pneg %p38
        %p208 = pneg %p62
        %p209 = pneg %p59
        %p210 = pneg %p83
        %p211 = pneg %p80
        %p212 = pneg %p109
        %p213 = pneg %p106
        %s214 = sand.u32 %s96, 1
        %s215 = scalar_lea.sflag [#allocation3], %s214
        %s216 = sand.u32 %s96, 1
        %s217 = smul.addr %s216, 16
        %s218 = scalar_lea.vmem [#allocation2], %s217
        %p219 = pneg %p135
        %p220 = pneg %p132
        %p221 = scmp.lt.s32.totalorder %s20, 1
        %s222 = scalar_select %p221, %s20, 1
        %s223 = smul.addr %s222, 8
        %s224 = scalar_lea.vmem %s4, %s223
        %p225 = pneg %p161
        %p226 = pneg %p158
        %p227 = scmp.lt.s32.totalorder %s20, 1
        %s228 = scalar_select %p227, %s20, 1
        %s229 = smul.addr %s228, 8
        %s230 = scalar_lea.vmem %s5, %s229
        %p231 = scmp.lt.s32.totalorder %s20, 1
        %s232 = scalar_select %p231, %s20, 1
        %s233 = smul.addr %s232, 2
        %s234 = smul.addr %s233, 4
        %s235 = scalar_lea.vmem %s0, %s234
        %p236 = scmp.lt.s32.totalorder %s20, 1
        %s237 = scalar_select %p236, %s20, 1
        %s238 = smul.addr %s237, 8
        %s239 = scalar_lea.vmem %s4, %s238
        %p240 = scmp.lt.s32.totalorder %s20, 1
        %s241 = scalar_select %p240, %s20, 1
        %s242 = smul.addr %s241, 8
        %s243 = scalar_lea.vmem %s5, %s242
        %v244 = vld [vmem:[%s235] sm:$0xff]
        %v245 = vld [vmem:[%s1] sm:$0xff]
        %v246 = vld [vmem:[%s1 + $0x8] sm:$0xff]
        %v247 = vld [vmem:[%s1 + $0x10] sm:$0xff]
        %v248 = vld [vmem:[%s1 + $0x18] sm:$0xff]
        %v249 = vld [vmem:[%s1 + $0x20] sm:$0xff]
        %v250 = vld [vmem:[%s1 + $0x28] sm:$0xff]
        %v251 = vld [vmem:[%s1 + $0x30] sm:$0xff]
        %v252 = vld [vmem:[%s1 + $0x38] sm:$0xff]
        %v253 = vld [vmem:[%s1 + $0x40] sm:$0xff]
        %255 = vst [vmem:[#allocation1] ss:$2 sm:$0xff] %v244
        %v256 = vld.sshfl [vmem:[#allocation1] sm:$0xff pattern:$0x75316420]
        %v257 = vld.sshfl [vmem:[#allocation1 + $0x8] sm:$0xff pattern:$0x75316420]
        %vm258 = vcmask 31744
        %v260 = vsel %vm258, %v245, 0
        %v263 = vsel %vm258, %v246, 0
        %v266 = vsel %vm258, %v247, 0
        %v269 = vsel %vm258, %v248, 0
        %v272 = vsel %vm258, %v249, 0
        %v275 = vsel %vm258, %v250, 0
        %v278 = vsel %vm258, %v251, 0
        %v281 = vsel %vm258, %v252, 0
        %v284 = vsel %vm258, %v253, 0
        %vm286 = vcmask 1043456
        %v287 = vsel %vm286, %v256, 0
        %v289 = vsel %vm286, %v257, 0
        %291 = vmatpush.msra.mxu0 0.0
        %292 = vmatpush.msra.mxu0 0.0
        %293 = vmatpush.msra.mxu0 0.0
        %294 = vmatpush.msra.mxu0 0.0
        %295 = vmatpush.msra.mxu0 0.0
        %296 = vmatpush.msra.mxu0 0.0
        %297 = vmatpush.msra.mxu0 0.0
        %298 = vmatpush.msra.mxu0 0.0
        %299 = vmatpush.msra.mxu0 0.0
        %300 = vmatpush.msra.mxu0 0.0
        %301 = vmatpush.msra.mxu0 0.0
        %302 = vmatpush.msra.mxu0 0.0
        %303 = vmatpush.msra.mxu0 0.0
        %304 = vmatpush.msra.mxu0 0.0
        %305 = vmatpush.msra.mxu0 0.0
        %306 = vmatpush.msra.mxu0 %v287
        %307 = vmatmul.f32.gmra.mxu0 %v260
        %v308 = vpop.f32.mrf.mxu0
        %v309 = vadd.f32 0.0, %v308
        %310 = vmatmul.f32.gmra.mxu0 %v263
        %v311 = vpop.f32.mrf.mxu0
        %v312 = vadd.f32 0.0, %v311
        %313 = vmatmul.f32.gmra.mxu0 %v266
        %v314 = vpop.f32.mrf.mxu0
        %v315 = vadd.f32 0.0, %v314
        %316 = vmatmul.f32.gmra.mxu0 %v269
        %v317 = vpop.f32.mrf.mxu0
        %v318 = vadd.f32 0.0, %v317
        %319 = vmatmul.f32.gmra.mxu0 %v272
        %v320 = vpop.f32.mrf.mxu0
        %v321 = vadd.f32 0.0, %v320
        %322 = vmatmul.f32.gmra.mxu0 %v275
        %v323 = vpop.f32.mrf.mxu0
        %v324 = vadd.f32 0.0, %v323
        %325 = vmatmul.f32.gmra.mxu0 %v278
        %v326 = vpop.f32.mrf.mxu0
        %v327 = vadd.f32 0.0, %v326
        %328 = vmatmul.f32.gmra.mxu0 %v281
        %v329 = vpop.f32.mrf.mxu0
        %v330 = vadd.f32 0.0, %v329
        %331 = vmatmul.f32.gmra.mxu0 %v284
        %v332 = vpop.f32.mrf.mxu0
        %v333 = vadd.f32 0.0, %v332
        %334 = vdwg.mxu0
        %335 = vmatpush.msra.mxu0 0.0
        %336 = vmatpush.msra.mxu0 0.0
        %337 = vmatpush.msra.mxu0 0.0
        %338 = vmatpush.msra.mxu0 0.0
        %339 = vmatpush.msra.mxu0 0.0
        %340 = vmatpush.msra.mxu0 0.0
        %341 = vmatpush.msra.mxu0 0.0
        %342 = vmatpush.msra.mxu0 0.0
        %343 = vmatpush.msra.mxu0 0.0
        %344 = vmatpush.msra.mxu0 0.0
        %345 = vmatpush.msra.mxu0 0.0
        %346 = vmatpush.msra.mxu0 0.0
        %347 = vmatpush.msra.mxu0 0.0
        %348 = vmatpush.msra.mxu0 0.0
        %349 = vmatpush.msra.mxu0 0.0
        %350 = vmatpush.msra.mxu0 %v289
        %351 = vmatmul.f32.gmra.mxu0 %v260
        %v352 = vpop.f32.mrf.mxu0
        %v353 = vadd.f32 0.0, %v352
        %354 = vmatmul.f32.gmra.mxu0 %v263
        %v355 = vpop.f32.mrf.mxu0
        %v356 = vadd.f32 0.0, %v355
        %357 = vmatmul.f32.gmra.mxu0 %v266
        %v358 = vpop.f32.mrf.mxu0
        %v359 = vadd.f32 0.0, %v358
        %360 = vmatmul.f32.gmra.mxu0 %v269
        %v361 = vpop.f32.mrf.mxu0
        %v362 = vadd.f32 0.0, %v361
        %363 = vmatmul.f32.gmra.mxu0 %v272
        %v364 = vpop.f32.mrf.mxu0
        %v365 = vadd.f32 0.0, %v364
        %366 = vmatmul.f32.gmra.mxu0 %v275
        %v367 = vpop.f32.mrf.mxu0
        %v368 = vadd.f32 0.0, %v367
        %369 = vmatmul.f32.gmra.mxu0 %v278
        %v370 = vpop.f32.mrf.mxu0
        %v371 = vadd.f32 0.0, %v370
        %372 = vmatmul.f32.gmra.mxu0 %v281
        %v373 = vpop.f32.mrf.mxu0
        %v374 = vadd.f32 0.0, %v373
        %375 = vmatmul.f32.gmra.mxu0 %v284
        %v376 = vpop.f32.mrf.mxu0
        %v377 = vadd.f32 0.0, %v376
        %378 = vdwg.mxu0
        %380 = vrot.lane.b32.xlu0 %v353, 17
        %v381 = vpop.permute.xlu0 %380
        %384 = vrot.lane.b32.xlu0 %v309, 17
        %v385 = vpop.permute.xlu0 %384
        %vm386 = vcmask 138240
        %v387 = vsel %vm386, %v385, %v381
        %v390 = vsel %vm386, %v381, %v385
        %v391 = vld [vmem:[%s2] sm:$0x3]
        %v393 = vperm.slane %v391, 0
        %v394 = vperm.slane %v391, 1
        %v397 = vmul.f32 %v390, %v393
        %v398 = vmul.f32 %v387, %v394
        %v399 = vadd.f32 %v397, 0.0
        %v400 = vadd.f32 %v398, 0.0
        %402 = vrot.lane.b32.xlu0 %v356, 16
        %v403 = vpop.permute.xlu0 %402
        %406 = vrot.lane.b32.xlu0 %v312, 16
        %v407 = vpop.permute.xlu0 %406
        %vm408 = vcmask 130048
        %v409 = vsel %vm408, %v407, %v403
        %v412 = vsel %vm408, %v403, %v407
        %s413 = scalar_lea.vmem %s2, 2
        %v414 = vld [vmem:[%s413] sm:$0x3]
        %v416 = vperm.slane %v414, 0
        %v417 = vperm.slane %v414, 1
        %v420 = vmul.f32 %v412, %v416
        %v421 = vmul.f32 %v409, %v417
        %v422 = vadd.f32 %v399, %v420
        %v423 = vadd.f32 %v400, %v421
        %425 = vrot.lane.b32.xlu0 %v359, 15
        %v426 = vpop.permute.xlu0 %425
        %429 = vrot.lane.b32.xlu0 %v315, 15
        %v430 = vpop.permute.xlu0 %429
        %vm431 = vcmask 121856
        %v432 = vsel %vm431, %v430, %v426
        %v435 = vsel %vm431, %v426, %v430
        %s436 = scalar_lea.vmem %s2, 4
        %v437 = vld [vmem:[%s436] sm:$0x3]
        %v439 = vperm.slane %v437, 0
        %v440 = vperm.slane %v437, 1
        %v443 = vmul.f32 %v435, %v439
        %v444 = vmul.f32 %v432, %v440
        %v445 = vadd.f32 %v422, %v443
        %v446 = vadd.f32 %v423, %v444
        %448 = vrot.lane.b32.xlu0 %v362, 1
        %v449 = vpop.permute.xlu0 %448
        %452 = vrot.lane.b32.xlu0 %v318, 1
        %v453 = vpop.permute.xlu0 %452
        %vm454 = vcmask 7168
        %v455 = vsel %vm454, %v453, %v449
        %v458 = vsel %vm454, %v449, %v453
        %s459 = scalar_lea.vmem %s2, 6
        %v460 = vld [vmem:[%s459] sm:$0x3]
        %v462 = vperm.slane %v460, 0
        %v463 = vperm.slane %v460, 1
        %v466 = vmul.f32 %v458, %v462
        %v467 = vmul.f32 %v455, %v463
        %v468 = vadd.f32 %v445, %v466
        %v469 = vadd.f32 %v446, %v467
        %v470 = vadd.f32 %v468, %v321
        %v471 = vadd.f32 %v469, %v365
        %474 = vrot.lane.b32.xlu0 %v324, 127
        %v475 = vpop.permute.xlu0 %474
        %476 = vrot.lane.b32.xlu0 %v368, 127
        %v477 = vpop.permute.xlu0 %476
        %vm478 = vcmask 1039360
        %v479 = vsel %vm478, %v475, %v477
        %v483 = vsel %vm478, %v477, %v475
        %s484 = scalar_lea.vmem %s2, 10
        %v485 = vld [vmem:[%s484] sm:$0x3]
        %v487 = vperm.slane %v485, 0
        %v488 = vperm.slane %v485, 1
        %v491 = vmul.f32 %v479, %v487
        %v492 = vmul.f32 %v483, %v488
        %v493 = vadd.f32 %v470, %v491
        %v494 = vadd.f32 %v471, %v492
        %497 = vrot.lane.b32.xlu0 %v327, 113
        %v498 = vpop.permute.xlu0 %497
        %499 = vrot.lane.b32.xlu0 %v371, 113
        %v500 = vpop.permute.xlu0 %499
        %vm501 = vcmask 924672
        %v502 = vsel %vm501, %v498, %v500
        %v506 = vsel %vm501, %v500, %v498
        %s507 = scalar_lea.vmem %s2, 12
        %v508 = vld [vmem:[%s507] sm:$0x3]
        %v510 = vperm.slane %v508, 0
        %v511 = vperm.slane %v508, 1
        %v514 = vmul.f32 %v502, %v510
        %v515 = vmul.f32 %v506, %v511
        %v516 = vadd.f32 %v493, %v514
        %v517 = vadd.f32 %v494, %v515
        %520 = vrot.lane.b32.xlu0 %v330, 112
        %v521 = vpop.permute.xlu0 %520
        %522 = vrot.lane.b32.xlu0 %v374, 112
        %v523 = vpop.permute.xlu0 %522
        %vm524 = vcmask 916480
        %v525 = vsel %vm524, %v521, %v523
        %v529 = vsel %vm524, %v523, %v521
        %s530 = scalar_lea.vmem %s2, 14
        %v531 = vld [vmem:[%s530] sm:$0x3]
        %v533 = vperm.slane %v531, 0
        %v534 = vperm.slane %v531, 1
        %v537 = vmul.f32 %v525, %v533
        %v538 = vmul.f32 %v529, %v534
        %v539 = vadd.f32 %v516, %v537
        %v540 = vadd.f32 %v517, %v538
        %543 = vrot.lane.b32.xlu0 %v333, 111
        %v544 = vpop.permute.xlu0 %543
        %545 = vrot.lane.b32.xlu0 %v377, 111
        %v546 = vpop.permute.xlu0 %545
        %vm547 = vcmask 908288
        %v548 = vsel %vm547, %v544, %v546
        %v552 = vsel %vm547, %v546, %v544
        %s553 = scalar_lea.vmem %s2, 16
        %v554 = vld [vmem:[%s553] sm:$0x3]
        %v556 = vperm.slane %v554, 0
        %v557 = vperm.slane %v554, 1
        %v560 = vmul.f32 %v548, %v556
        %v561 = vmul.f32 %v552, %v557
        %v562 = vadd.f32 %v539, %v560
        %v563 = vadd.f32 %v540, %v561
        %564 = vst [vmem:[%s218] sm:$0xff] %v562
        %565 = vst [vmem:[%s218 + $0x8] sm:$0xff] %v563
        %v566 = vadd.f32 %v562, %v563
        %567 = vadd.xlane.f32.xlu0 %v566
        %v568 = vpop.xlane.xlu0 %567
        %569 = vst.msk [vmem:[%s239] sm:$0xff] %vm454, %v568
        %v570 = vmul.f32 %v562, %v562
        %v571 = vmul.f32 %v563, %v563
        %v572 = vadd.f32 %v570, %v571
        %573 = vadd.xlane.f32.xlu0 %v572
        %v574 = vpop.xlane.xlu0 %573
        %575 = vst.msk [vmem:[%s243] sm:$0xff] %vm454, %v574
        %s576 = sand.u32 %s96, 1
        %s577 = scalar_lea.sflag [#allocation3], %s576
        %s578 = sand.u32 %s96, 1
        %s579 = smul.addr %s578, 16
        %s580 = scalar_lea.vmem [#allocation2], %s579
        %p581 = scmp.lt.s32.totalorder %s20, 1
        %s582 = scalar_select %p581, %s20, 1
        %s583 = smul.addr %s582, 8
        %s584 = scalar_lea.vmem %s4, %s583
        %p585 = scmp.lt.s32.totalorder %s20, 1
        %s586 = scalar_select %p585, %s20, 1
        %s587 = smul.addr %s586, 8
        %s588 = scalar_lea.vmem %s5, %s587
        // Predicated region
        $region33: #{tpu_custom_call.1} parent=31 // pred_check
          %p589 = pneg %p106
        $region34: #{tpu_custom_call.1} parent=31 // pred_check_branch
          %591 = sbr.rel (%p589) target = $region36
        $region35: #{tpu_custom_call.1} parent=31 // pred_region
          %593 = vsyncadd %s577, 0
          %s594 = smul.addr %s20, 2
          %s595 = smul.addr %s594, 8
          %s596 = scalar_lea.hbm %s3, %s595
          %s598 = sshll.u32 %s580, 4
          %s599 = int_to_ptr.vmem [resolvable:$true] %s598
          %s600 = sshll.u32 %s596, 4
          %s601 = int_to_ptr.hbm [resolvable:$true] %s600
          %603 = dma.vmem_to_hbm [thread:$0]  %s599, 256, %s601, %s577
        $region36: #{tpu_custom_call.1} parent=31 // pred_fallthru
          _
        // Predicated region
        $region37: #{tpu_custom_call.1} parent=31 // pred_check
          %p604 = pneg %p132
        $region38: #{tpu_custom_call.1} parent=31 // pred_check_branch
          %606 = sbr.rel (%p604) target = $region40
        $region39: #{tpu_custom_call.1} parent=31 // pred_region
          _
        $region40: #{tpu_custom_call.1} parent=31 // pred_fallthru
          _
        // Predicated region
        $region41: #{tpu_custom_call.1} parent=31 // pred_check
          %p607 = pneg %p158
        $region42: #{tpu_custom_call.1} parent=31 // pred_check_branch
          %609 = sbr.rel (%p607) target = $region44
        $region43: #{tpu_custom_call.1} parent=31 // pred_region
          _
        $region44: #{tpu_custom_call.1} parent=31 // pred_fallthru
          _
      $region32: #{tpu_custom_call.1} parent=5 // pred_fallthru
        _
      %p610 = scmp.le.s32.totalorder 2, %s15
      // Predicated region
      $region45: #{tpu_custom_call.1} parent=5 // pred_check
        %p611 = pneg %p610
      $region46: #{tpu_custom_call.1} parent=5 // pred_check_branch
        %613 = sbr.rel (%p611) target = $region48
      $region47: #{tpu_custom_call.1} parent=5 // pred_region
        %s614 = ssub.s32 %s15, 2
        // Predicated region
        $region49: #{tpu_custom_call.1} parent=47 // pred_check
          %p615 = pneg %p112
        $region50: #{tpu_custom_call.1} parent=47 // pred_check_branch
          %617 = sbr.rel (%p615) target = $region52
        $region51: #{tpu_custom_call.1} parent=47 // pred_region
          %s618 = sand.u32 %s97, 1
          %s619 = scalar_lea.sflag [#allocation3], %s618
          %s620 = sand.u32 %s97, 1
          %s621 = smul.addr %s620, 16
          %s622 = scalar_lea.vmem [#allocation2], %s621
          %624 = dma.done %s619, 256
        $region52: #{tpu_custom_call.1} parent=47 // pred_fallthru
          _
        // Predicated region
        $region53: #{tpu_custom_call.1} parent=47 // pred_check
          %p625 = pneg %p138
        $region54: #{tpu_custom_call.1} parent=47 // pred_check_branch
          %627 = sbr.rel (%p625) target = $region56
        $region55: #{tpu_custom_call.1} parent=47 // pred_region
          %p628 = scmp.lt.s32.totalorder %s21, 1
          %s629 = scalar_select %p628, %s21, 1
          %s630 = smul.addr %s629, 8
          %s631 = scalar_lea.vmem %s4, %s630
        $region56: #{tpu_custom_call.1} parent=47 // pred_fallthru
          _
        // Predicated region
        $region57: #{tpu_custom_call.1} parent=47 // pred_check
          %p632 = pneg %p164
        $region58: #{tpu_custom_call.1} parent=47 // pred_check_branch
          %634 = sbr.rel (%p632) target = $region60
        $region59: #{tpu_custom_call.1} parent=47 // pred_region
          %p635 = scmp.lt.s32.totalorder %s21, 1
          %s636 = scalar_select %p635, %s21, 1
          %s637 = smul.addr %s636, 8
          %s638 = scalar_lea.vmem %s5, %s637
        $region60: #{tpu_custom_call.1} parent=47 // pred_fallthru
          _
      $region48: #{tpu_custom_call.1} parent=5 // pred_fallthru
        _
    $region6: #{tpu_custom_call.1} parent=1 // loop_footer
      %s19 = sadd.s32 1, %s15
    $region7: #{tpu_custom_call.1} parent=1 // loop_footer_branch
      %14 = sbr.rel target = $region3
    $region8: #{tpu_custom_call.1} parent=1 // loop_exit
      _
    %639 = vsyncpa [#allocation3], 1
    %s640 = scalar_lea.sflag [#allocation3], 1
    %641 = vsyncpa %s640, 1

</llo_original>
